<compile_context>
chip_gen: v7x
topology: tpu7x:2x2x1
jax: 0.10.0
libtpu: 0.0.40
codegen_flags: <defaults>
</compile_context>

<pallas_src>
import math

import jax
import jax.numpy as jnp
from jax.experimental import pallas as pl
from jax.experimental.pallas import tpu as pltpu


def _round_up(x: int, m: int) -> int:
    return (x + m - 1) // m * m


def _mlp_kernel(x_ref, w1_ref, b1_ref, w2_ref, b2_ref, o_ref):
    # hidden = relu(x @ W1 + b1): bf16 MXU matmul, f32 accumulate, f32 epilogue.
    x = x_ref[...].astype(jnp.bfloat16)            # cast in VMEM; x stays f32 in HBM
    h = jnp.dot(x, w1_ref[...], preferred_element_type=jnp.float32)
    h = jnp.maximum(h + b1_ref[...], 0.0)          # b1 is (1, hidden) -> broadcasts
    # out = hidden @ W2 + b2, written directly in the final output dtype.
    o = jnp.dot(h.astype(jnp.bfloat16), w2_ref[...],
                preferred_element_type=jnp.float32)
    o_ref[...] = (o + b2_ref[...]).astype(o_ref.dtype)


def derivative_net_forward(x, w1, b1, w2, b2, *, out_dtype=None, tile_m_cap=512):
    """DerivativeNet forward: relu(x @ W1 + b1) @ W2 + b2 as one fused Pallas kernel.

    x : [..., in_features] float array (kept as-is in HBM, cast to bf16 in VMEM)
    w1: [in_features, hidden]  bf16 (pre-transposed vs PyTorch's [out, in])
    w2: [hidden, out_features] bf16
    b1: [1, hidden] f32, b2: [1, out_features] f32
    Returns [..., out_features] in `out_dtype` (default: x.dtype).
    """
    orig_shape = x.shape
    in_features = orig_shape[-1]
    hidden = w1.shape[1]
    out_features = w2.shape[1]
    out_dtype = x.dtype if out_dtype is None else out_dtype
    out_isize = jnp.dtype(out_dtype).itemsize

    rows = math.prod(orig_shape[:-1]) if len(orig_shape) > 1 else 1
    x2d = x.reshape(rows, in_features)

    # Row tiling: >=2 grid steps when rows >= 32 (keeps both v7x TensorCores busy),
    # sublane-aligned (16) tiles; the final tile is partial (masked stores), so at
    # most 15 rows of wasted work and NO wrapper-side row padding.
    target_tiles = max(2, pl.cdiv(rows, tile_m_cap))
    tile_m = min(tile_m_cap, max(16, _round_up(pl.cdiv(rows, target_tiles), 16)))
    grid = (pl.cdiv(rows, tile_m),)

    flops = 2 * rows * (in_features * hidden + hidden * out_features)
    bytes_accessed = (rows * in_features * x.dtype.itemsize
                      + rows * out_features * out_isize
                      + (in_features * hidden + hidden * out_features) * 2
                      + (hidden + out_features) * 4)

    # VMEM budget: double-buffered x/out tiles + (double-buffered) resident
    # weights/biases + f32 intermediates; 4x headroom for lane/sublane padding,
    # capped at 48 MiB so it fits v7x's 64 MiB VMEM with room to spare.
    vmem_est = (2 * tile_m * in_features * x.dtype.itemsize
                + 2 * tile_m * out_features * out_isize
                + 2 * (in_features * hidden + hidden * out_features) * 2
                + 2 * (hidden + out_features) * 4
                + tile_m * (hidden + out_features) * 4)
    vmem_limit = min(max(4 * vmem_est, 16 * 1024 * 1024), 48 * 1024 * 1024)

    out2d = pl.pallas_call(
        _mlp_kernel,
        out_shape=jax.ShapeDtypeStruct((rows, out_features), out_dtype),
        grid_spec=pltpu.PrefetchScalarGridSpec(
            num_scalar_prefetch=0,
            grid=grid,
            in_specs=[
                pl.BlockSpec((tile_m, in_features), lambda i: (i, 0)),   # x: per row tile
                pl.BlockSpec((in_features, hidden), lambda i: (0, 0)),   # W1: VMEM-resident
                pl.BlockSpec((1, hidden), lambda i: (0, 0)),             # b1: resident
                pl.BlockSpec((hidden, out_features), lambda i: (0, 0)),  # W2: resident
                pl.BlockSpec((1, out_features), lambda i: (0, 0)),       # b2: resident
            ],
            out_specs=pl.BlockSpec((tile_m, out_features), lambda i: (i, 0)),
        ),
        compiler_params=pltpu.CompilerParams(
            dimension_semantics=("parallel",),   # row tiles shard across TCs on v7x
            vmem_limit_bytes=vmem_limit,
        ),
        cost_estimate=pl.CostEstimate(
            flops=flops, transcendentals=0, bytes_accessed=bytes_accessed),
    )(x2d, w1, b1, w2, b2)

    # No slice, no astype: kernel already produced the final (rows, out_features)
    # array in the final dtype.  Reshape is metadata-only.
    return out2d.reshape(orig_shape[:-1] + (out_features,))


def init_params(key, in_features, hidden, out_features):
    """Xavier-normal weights, bias filled with 0.01 (matches DerivativeNet.init_weights).
    Weights are stored pre-transposed ([in, out]) so the kernel does x @ W."""
    k1, k2 = jax.random.split(key)
    std1 = (2.0 / (in_features + hidden)) ** 0.5
    std2 = (2.0 / (hidden + out_features)) ** 0.5
    w1 = jax.random.normal(k1, (in_features, hidden), jnp.float32) * std1
    w2 = jax.random.normal(k2, (hidden, out_features), jnp.float32) * std2
    b1 = jnp.full((1, hidden), 0.01, jnp.float32)
    b2 = jnp.full((1, out_features), 0.01, jnp.float32)
    return w1, b1, w2, b2


def prepare_params(w1, w2):
    """One-time bf16 cast of the weights (hoisted out of the per-call wrapper)."""
    return w1.astype(jnp.bfloat16), w2.astype(jnp.bfloat16)


if __name__ == "__main__":
    # Small shapes consistent with the module defaults (in=100, hidden=128, out=100).
    batch, n = 2, 8
    in_features, hidden, out_features = 100, 128, 100

    key = jax.random.PRNGKey(0)
    kx, kp = jax.random.split(key)

    x = jax.random.normal(kx, (batch, n, in_features), jnp.float32)
    w1, b1, w2, b2 = init_params(kp, in_features, hidden, out_features)
    w1_bf, w2_bf = prepare_params(w1, w2)   # done once, not per forward call

    # Default path: output dtype == x.dtype (matches the PyTorch module's f32 output).
    out = derivative_net_forward(x, w1_bf, b1, w2_bf, b2)
    out = jax.block_until_ready(out)
    assert out.shape == (batch, n, out_features)
    assert out.dtype == x.dtype

    # Reduced-writeback path from the perf review: bf16 output halves HBM writeback.
    out_bf16 = jax.block_until_ready(
        derivative_net_forward(x, w1_bf, b1, w2_bf, b2, out_dtype=jnp.bfloat16))
    assert out_bf16.shape == (batch, n, out_features)
    assert out_bf16.dtype == jnp.bfloat16

    # Tight reference: mirror the kernel's bf16 input/hidden rounding, f32 accumulate.
    hp = jax.lax.Precision.HIGHEST
    x2d = x.reshape(-1, in_features)
    xb = x2d.astype(jnp.bfloat16).astype(jnp.float32)
    w1b = w1.astype(jnp.bfloat16).astype(jnp.float32)
    w2b = w2.astype(jnp.bfloat16).astype(jnp.float32)
    h_ref = jnp.maximum(jnp.dot(xb, w1b, precision=hp) + b1, 0.0)
    hb = h_ref.astype(jnp.bfloat16).astype(jnp.float32)
    ref_bf16 = (jnp.dot(hb, w2b, precision=hp) + b2).reshape(batch, n, out_features)
    assert jnp.allclose(out, ref_bf16, atol=2e-3, rtol=2e-3)
    assert jnp.allclose(out_bf16.astype(jnp.float32), ref_bf16, atol=4e-2, rtol=2e-2)

    # Loose check vs the pure-f32 PyTorch-equivalent math (bf16 matmul tolerance).
    h32 = jnp.maximum(jnp.dot(x2d, w1, precision=hp) + b1, 0.0)
    ref_f32 = (jnp.dot(h32, w2, precision=hp) + b2).reshape(batch, n, out_features)
    assert jnp.allclose(out, ref_f32, atol=1e-1, rtol=1e-1)

    print("KERNEL_OK")
</pallas_src>

<mosaic_0001>
module attributes {stable_mosaic.version = 11 : i64} {
  func.func @_mlp_kernel(%arg0: i32, %arg1: memref<16x100xf32, #tpu.memory_space<vmem>>, %arg2: memref<100x128xbf16, #tpu.memory_space<vmem>>, %arg3: memref<1x128xf32, #tpu.memory_space<vmem>>, %arg4: memref<128x100xbf16, #tpu.memory_space<vmem>>, %arg5: memref<1x100xf32, #tpu.memory_space<vmem>>, %arg6: memref<16x100xf32, #tpu.memory_space<vmem>>) attributes {dimension_semantics = [#tpu.dimension_semantics<parallel>], iteration_bounds = array<i64: 1>, scalar_prefetch = 0 : i64, scratch_operands = 0 : i64, tpu.core_type = #tpu.core_type<tc>, window_params = [{transform_indices = @transform_0, window_bounds = array<i64: 16, 100>}, {pipeline_mode = #tpu.pipeline_mode<synchronous>, transform_indices = @transform_1, window_bounds = array<i64: 100, 128>}, {pipeline_mode = #tpu.pipeline_mode<synchronous>, transform_indices = @transform_2, window_bounds = array<i64: 1, 128>}, {pipeline_mode = #tpu.pipeline_mode<synchronous>, transform_indices = @transform_3, window_bounds = array<i64: 128, 100>}, {pipeline_mode = #tpu.pipeline_mode<synchronous>, transform_indices = @transform_4, window_bounds = array<i64: 1, 100>}, {transform_indices = @transform_5, window_bounds = array<i64: 16, 100>}]} {
    %c0 = arith.constant 0 : index
    %c0_0 = arith.constant 0 : index
    %0 = vector.load %arg1[%c0, %c0_0] : memref<16x100xf32, #tpu.memory_space<vmem>>, vector<16x100xf32>
    %1 = arith.truncf %0 : vector<16x100xf32> to vector<16x100xbf16>
    %c0_1 = arith.constant 0 : index
    %c0_2 = arith.constant 0 : index
    %2 = vector.load %arg2[%c0_1, %c0_2] : memref<100x128xbf16, #tpu.memory_space<vmem>>, vector<100x128xbf16>
    %cst = arith.constant dense<0.000000e+00> : vector<16x128xf32>
    %3 = tpu.matmul %1, %2, %cst {dimension_numbers = #tpu.dot_dimension_numbers<[1], [0], [0], [1], [0, 0, 1, 1], [], []>} : vector<16x100xbf16>, vector<100x128xbf16>, vector<16x128xf32> -> vector<16x128xf32>
    %c0_3 = arith.constant 0 : index
    %c0_4 = arith.constant 0 : index
    %4 = vector.load %arg3[%c0_3, %c0_4] : memref<1x128xf32, #tpu.memory_space<vmem>>, vector<1x128xf32>
    %5 = vector.broadcast %4 : vector<1x128xf32> to vector<16x128xf32>
    %6 = arith.addf %3, %5 : vector<16x128xf32>
    %cst_5 = arith.constant 0.000000e+00 : f32
    %7 = vector.broadcast %cst_5 : f32 to vector<16x128xf32>
    %8 = arith.maximumf %6, %7 : vector<16x128xf32>
    %9 = arith.truncf %8 : vector<16x128xf32> to vector<16x128xbf16>
    %c0_6 = arith.constant 0 : index
    %c0_7 = arith.constant 0 : index
    %10 = vector.load %arg4[%c0_6, %c0_7] : memref<128x100xbf16, #tpu.memory_space<vmem>>, vector<128x100xbf16>
    %cst_8 = arith.constant dense<0.000000e+00> : vector<16x100xf32>
    %11 = tpu.matmul %9, %10, %cst_8 {dimension_numbers = #tpu.dot_dimension_numbers<[1], [0], [0], [1], [0, 0, 1, 1], [], []>} : vector<16x128xbf16>, vector<128x100xbf16>, vector<16x100xf32> -> vector<16x100xf32>
    %c0_9 = arith.constant 0 : index
    %c0_10 = arith.constant 0 : index
    %12 = vector.load %arg5[%c0_9, %c0_10] : memref<1x100xf32, #tpu.memory_space<vmem>>, vector<1x100xf32>
    %13 = vector.broadcast %12 : vector<1x100xf32> to vector<16x100xf32>
    %14 = arith.addf %11, %13 : vector<16x100xf32>
    %c0_11 = arith.constant 0 : index
    %c0_12 = arith.constant 0 : index
    %15 = vector.load %arg6[%c0_11, %c0_12] : memref<16x100xf32, #tpu.memory_space<vmem>>, vector<16x100xf32>
    tpu.vector_store %arg6[%c0_11, %c0_12], %14 {strides = array<i32>} : memref<16x100xf32, #tpu.memory_space<vmem>>, vector<16x100xf32>,
    return
  }
  func.func @transform_0(%arg0: i32) -> (i32, i32) {
    %c0_i32 = arith.constant 0 : i32
    %c0_i32_0 = arith.constant 0 : i32
    return %arg0, %c0_i32 : i32, i32
  }
  func.func @transform_1(%arg0: i32) -> (i32, i32) {
    %c0_i32 = arith.constant 0 : i32
    %c0_i32_0 = arith.constant 0 : i32
    %c0_i32_1 = arith.constant 0 : i32
    return %c0_i32, %c0_i32_0 : i32, i32
  }
  func.func @transform_2(%arg0: i32) -> (i32, i32) {
    %c0_i32 = arith.constant 0 : i32
    %c0_i32_0 = arith.constant 0 : i32
    %c0_i32_1 = arith.constant 0 : i32
    return %c0_i32, %c0_i32_0 : i32, i32
  }
  func.func @transform_3(%arg0: i32) -> (i32, i32) {
    %c0_i32 = arith.constant 0 : i32
    %c0_i32_0 = arith.constant 0 : i32
    %c0_i32_1 = arith.constant 0 : i32
    return %c0_i32, %c0_i32_0 : i32, i32
  }
  func.func @transform_4(%arg0: i32) -> (i32, i32) {
    %c0_i32 = arith.constant 0 : i32
    %c0_i32_0 = arith.constant 0 : i32
    %c0_i32_1 = arith.constant 0 : i32
    return %c0_i32, %c0_i32_0 : i32, i32
  }
  func.func @transform_5(%arg0: i32) -> (i32, i32) {
    %c0_i32 = arith.constant 0 : i32
    %c0_i32_0 = arith.constant 0 : i32
    return %arg0, %c0_i32 : i32, i32
  }
}

</mosaic_0001>

<llo_original>
// kernel: tpu_custom_call.1
$region0: #{tpu_custom_call.1}
  #allocation0 [shape = 'u32[]', space=smem, size = 0x4, offset = 0x4, fixed_abs, tag = 'smem constant byte address 0x4 - core index']
  #allocation1 [shape = 'u32[144,128]{1,0:T(1,128)}', space=vmem, size = 0x12000, scoped, tag = 'internal scratch']
  %s0 = inlined_call_operand.vmem [shape: f32[16,100], index: 0, kind: input, shape index: {}]
  %s1 = inlined_call_operand.vmem [shape: bf16[100,128], index: 1, kind: input, shape index: {}]
  %s2 = inlined_call_operand.vmem [shape: f32[1,128], index: 2, kind: input, shape index: {}]
  %s3 = inlined_call_operand.vmem [shape: bf16[128,100], index: 3, kind: input, shape index: {}]
  %s4 = inlined_call_operand.vmem [shape: f32[1,100], index: 4, kind: input, shape index: {}]
  %s5 = inlined_call_operand.hbm [shape: f32[16,100], index: 5, kind: output, shape index: {}]
  %s6 = sld [smem:[#allocation0]]
  $region30: #{tpu_custom_call.1} parent=0
    _
  %s8 = ssub.s32 1, %s6
  %s9 = scalar_select 0, %s8, %s6
  $region1: #{tpu_custom_call.1} parent=0
    #allocation2 [shape = 'u8[8192]{0}', space=vmem, size = 0x2000, scoped, tag = 'output window, operand 0, single buffered']
    #allocation3 [shape = 's32[1]{0}', space=sflag, size = 0x4, scoped, tag = 'scoped memory for tpu_custom_call.1']
    %10 = vsyncpa [#allocation3], 0
    // Predicated region
    $region2: #{tpu_custom_call.1} parent=1 // pred_check
      _
    $region3: #{tpu_custom_call.1} parent=1 // pred_check_branch
      %12 = sbr.rel (0) target = $region5
    $region4: #{tpu_custom_call.1} parent=1 // pred_region
      _
    $region5: #{tpu_custom_call.1} parent=1 // pred_fallthru
      _
    // Predicated region
    $region6: #{tpu_custom_call.1} parent=1 // pred_check
      _
    $region7: #{tpu_custom_call.1} parent=1 // pred_check_branch
      %14 = sbr.rel (0) target = $region9
    $region8: #{tpu_custom_call.1} parent=1 // pred_region
      _
    $region9: #{tpu_custom_call.1} parent=1 // pred_fallthru
      _
    // Predicated region
    $region10: #{tpu_custom_call.1} parent=1 // pred_check
      _
    $region11: #{tpu_custom_call.1} parent=1 // pred_check_branch
      %16 = sbr.rel (0) target = $region13
    $region12: #{tpu_custom_call.1} parent=1 // pred_region
      _
    $region13: #{tpu_custom_call.1} parent=1 // pred_fallthru
      _
    // Predicated region
    $region14: #{tpu_custom_call.1} parent=1 // pred_check
      _
    $region15: #{tpu_custom_call.1} parent=1 // pred_check_branch
      %18 = sbr.rel (0) target = $region17
    $region16: #{tpu_custom_call.1} parent=1 // pred_region
      _
    $region17: #{tpu_custom_call.1} parent=1 // pred_fallthru
      _
    // Predicated region
    $region18: #{tpu_custom_call.1} parent=1 // pred_check
      _
    $region19: #{tpu_custom_call.1} parent=1 // pred_check_branch
      %20 = sbr.rel (0) target = $region21
    $region20: #{tpu_custom_call.1} parent=1 // pred_region
      _
    $region21: #{tpu_custom_call.1} parent=1 // pred_fallthru
      _
    %v22 = vld [vmem:[%s0] sm:$0xff]
    %v23 = vld [vmem:[%s0 + $0x8] sm:$0xff]
    %v24 = vpack.c.bf16 %v23, %v22
    %v25 = vld [vmem:[%s1] sm:$0xf]
    %v26 = vld [vmem:[%s1 + $0x4] sm:$0xf]
    %v27 = vld [vmem:[%s1 + $0x8] sm:$0xf]
    %v28 = vld [vmem:[%s1 + $0xc] sm:$0xf]
    %v29 = vld [vmem:[%s1 + $0x10] sm:$0xf]
    %v30 = vld [vmem:[%s1 + $0x14] sm:$0xf]
    %v31 = vld [vmem:[%s1 + $0x18] sm:$0xf]
    %v32 = vld [vmem:[%s1 + $0x1c] sm:$0xf]
    %v33 = vld [vmem:[%s1 + $0x20] sm:$0xf]
    %v34 = vld [vmem:[%s1 + $0x24] sm:$0xf]
    %v35 = vld [vmem:[%s1 + $0x28] sm:$0xf]
    %v36 = vld [vmem:[%s1 + $0x2c] sm:$0xf]
    %v37 = vld [vmem:[%s1 + $0x30] sm:$0x3]
    %v38 = vld [vmem:[%s2] sm:$0x1]
    %v40 = vlaneseq
    %v41 = vshrl.u32 %v40, 7
    %v42 = vsub.s32 0, %v41
    %v43 = vrot.slane %v38, %v42
    %v58 = vunpack.c.l.b16 %v25
    %v59 = vunpack.c.l.b16 %v26
    %v60 = vunpack.c.l.b16 %v27
    %v61 = vunpack.c.l.b16 %v28
    %v62 = vunpack.c.l.b16 %v29
    %v63 = vunpack.c.l.b16 %v30
    %v64 = vunpack.c.l.b16 %v31
    %v65 = vunpack.c.l.b16 %v32
    %v66 = vunpack.c.l.b16 %v33
    %v67 = vunpack.c.l.b16 %v34
    %v68 = vunpack.c.l.b16 %v35
    %v69 = vunpack.c.l.b16 %v36
    %v70 = vunpack.c.l.b16 %v37
    %v71 = vpack.c.b16 %v59, %v58
    %v72 = vpack.c.b16 %v61, %v60
    %v73 = vpack.c.b16 %v63, %v62
    %v74 = vpack.c.b16 %v65, %v64
    %v75 = vpack.c.b16 %v67, %v66
    %v76 = vpack.c.b16 %v69, %v68
    %v77 = vpack.c.b16 %v70, %v70
    %vm84 = vcmask 818176
    %v86 = vsel %vm84, %v24, 0
    %vm88 = vcmask 1041408
    %v90 = vsel %vm88, %v77, 0
    %92 = vmatprep.subr.bf16.mxu0 0
    %93 = vmatpush1.bf16.msra.mxu0 %v71
    %94 = vmatprep.subr.bf16.mxu0 0
    %95 = vmatpush1.bf16.msra.mxu0 %v72
    %96 = vmatprep.subr.bf16.mxu0 0
    %97 = vmatpush1.bf16.msra.mxu0 %v73
    %98 = vmatprep.subr.bf16.mxu0 0
    %99 = vmatpush1.bf16.msra.mxu0 %v74
    %100 = vmatprep.subr.bf16.mxu0 0
    %101 = vmatpush1.bf16.msra.mxu0 %v75
    %102 = vmatprep.subr.bf16.mxu0 0
    %103 = vmatpush1.bf16.msra.mxu0 %v76
    %104 = vmatprep.subr.bf16.mxu0 0
    %105 = vmatpush1.bf16.msra.mxu0 %v90
    %106 = vmatprep.subr.bf16.mxu0 0
    %107 = vmatpush1.bf16.msra.mxu0 0
    %108 = vmatprep.subr.bf16.mxu0 0
    %109 = vmatpush1.bf16.msra.mxu0 0
    %110 = vmatprep.subr.bf16.mxu0 0
    %111 = vmatpush1.bf16.msra.mxu0 0
    %112 = vmatprep.subr.bf16.mxu0 0
    %113 = vmatpush1.bf16.msra.mxu0 0
    %114 = vmatprep.subr.bf16.mxu0 0
    %115 = vmatpush1.bf16.msra.mxu0 0
    %116 = vmatprep.subr.bf16.mxu0 0
    %117 = vmatpush1.bf16.msra.mxu0 0
    %118 = vmatprep.subr.bf16.mxu0 0
    %119 = vmatpush1.bf16.msra.mxu0 0
    %120 = vmatprep.subr.bf16.mxu0 0
    %121 = vmatpush1.bf16.msra.mxu0 0
    %122 = vmatprep.subr.bf16.mxu0 0
    %123 = vmatpush1.bf16.msra.mxu0 0
    %124 = vmatprep.mubr.bf16.mxu0 0
    %125 = vmatmul.mubr.bf16.gmra.mrb[0].mxu0 %v86
    %v126 = vpop.f32.mrb[0].mxu0
    %v127 = vadd.f32 %v43, %v126
    %v128 = vpop.f32.mrb[0].mxu0
    %v129 = vpop.f32.mrb[0].mxu0
    %v130 = vadd.f32 %v43, %v129
    %v131 = vpop.f32.mrb[0].mxu0
    %132 = vdwg.mxu0
    %v133 = vmax.f32 %v127, 0.0
    %v134 = vmax.f32 %v130, 0.0
    %v135 = vpack.c.bf16 %v134, %v133
    %v136 = vld [vmem:[%s3] sm:$0xf]
    %v137 = vld [vmem:[%s3 + $0x4] sm:$0xf]
    %v138 = vld [vmem:[%s3 + $0x8] sm:$0xf]
    %v139 = vld [vmem:[%s3 + $0xc] sm:$0xf]
    %v140 = vld [vmem:[%s3 + $0x10] sm:$0xf]
    %v141 = vld [vmem:[%s3 + $0x14] sm:$0xf]
    %v142 = vld [vmem:[%s3 + $0x18] sm:$0xf]
    %v143 = vld [vmem:[%s3 + $0x1c] sm:$0xf]
    %v144 = vld [vmem:[%s3 + $0x20] sm:$0xf]
    %v145 = vld [vmem:[%s3 + $0x24] sm:$0xf]
    %v146 = vld [vmem:[%s3 + $0x28] sm:$0xf]
    %v147 = vld [vmem:[%s3 + $0x2c] sm:$0xf]
    %v148 = vld [vmem:[%s3 + $0x30] sm:$0xf]
    %v149 = vld [vmem:[%s3 + $0x34] sm:$0xf]
    %v150 = vld [vmem:[%s3 + $0x38] sm:$0xf]
    %v151 = vld [vmem:[%s3 + $0x3c] sm:$0xf]
    %v152 = vld [vmem:[%s4] sm:$0x1]
    %v154 = vlaneseq
    %v155 = vshrl.u32 %v154, 7
    %v156 = vsub.s32 0, %v155
    %v157 = vrot.slane %v152, %v156
    %v175 = vunpack.c.l.b16 %v136
    %v176 = vunpack.c.l.b16 %v137
    %v177 = vunpack.c.l.b16 %v138
    %v178 = vunpack.c.l.b16 %v139
    %v179 = vunpack.c.l.b16 %v140
    %v180 = vunpack.c.l.b16 %v141
    %v181 = vunpack.c.l.b16 %v142
    %v182 = vunpack.c.l.b16 %v143
    %v183 = vunpack.c.l.b16 %v144
    %v184 = vunpack.c.l.b16 %v145
    %v185 = vunpack.c.l.b16 %v146
    %v186 = vunpack.c.l.b16 %v147
    %v187 = vunpack.c.l.b16 %v148
    %v188 = vunpack.c.l.b16 %v149
    %v189 = vunpack.c.l.b16 %v150
    %v190 = vunpack.c.l.b16 %v151
    %v191 = vpack.c.b16 %v176, %v175
    %v192 = vpack.c.b16 %v178, %v177
    %v193 = vpack.c.b16 %v180, %v179
    %v194 = vpack.c.b16 %v182, %v181
    %v195 = vpack.c.b16 %v184, %v183
    %v196 = vpack.c.b16 %v186, %v185
    %v197 = vpack.c.b16 %v188, %v187
    %v198 = vpack.c.b16 %v190, %v189
    %207 = vmatprep.subr.bf16.mxu0 0
    %208 = vmatpush1.bf16.msra.mxu0 %v191
    %209 = vmatprep.subr.bf16.mxu0 0
    %210 = vmatpush1.bf16.msra.mxu0 %v192
    %211 = vmatprep.subr.bf16.mxu0 0
    %212 = vmatpush1.bf16.msra.mxu0 %v193
    %213 = vmatprep.subr.bf16.mxu0 0
    %214 = vmatpush1.bf16.msra.mxu0 %v194
    %215 = vmatprep.subr.bf16.mxu0 0
    %216 = vmatpush1.bf16.msra.mxu0 %v195
    %217 = vmatprep.subr.bf16.mxu0 0
    %218 = vmatpush1.bf16.msra.mxu0 %v196
    %219 = vmatprep.subr.bf16.mxu0 0
    %220 = vmatpush1.bf16.msra.mxu0 %v197
    %221 = vmatprep.subr.bf16.mxu0 0
    %222 = vmatpush1.bf16.msra.mxu0 %v198
    %223 = vmatprep.subr.bf16.mxu0 0
    %224 = vmatpush1.bf16.msra.mxu0 0
    %225 = vmatprep.subr.bf16.mxu0 0
    %226 = vmatpush1.bf16.msra.mxu0 0
    %227 = vmatprep.subr.bf16.mxu0 0
    %228 = vmatpush1.bf16.msra.mxu0 0
    %229 = vmatprep.subr.bf16.mxu0 0
    %230 = vmatpush1.bf16.msra.mxu0 0
    %231 = vmatprep.subr.bf16.mxu0 0
    %232 = vmatpush1.bf16.msra.mxu0 0
    %233 = vmatprep.subr.bf16.mxu0 0
    %234 = vmatpush1.bf16.msra.mxu0 0
    %235 = vmatprep.subr.bf16.mxu0 0
    %236 = vmatpush1.bf16.msra.mxu0 0
    %237 = vmatprep.subr.bf16.mxu0 0
    %238 = vmatpush1.bf16.msra.mxu0 0
    %239 = vmatprep.mubr.bf16.mxu0 0
    %240 = vmatmul.mubr.bf16.gmra.mrb[0].mxu0 %v135
    %v241 = vpop.f32.mrb[0].mxu0
    %v242 = vadd.f32 %v157, %v241
    %v243 = vpop.f32.mrb[0].mxu0
    %v244 = vpop.f32.mrb[0].mxu0
    %v245 = vadd.f32 %v157, %v244
    %v246 = vpop.f32.mrb[0].mxu0
    %247 = vdwg.mxu0
    %248 = vst.msk [vmem:[#allocation2] sm:$0xff] %vm84, %v242
    %249 = vst.msk [vmem:[#allocation2 + $0x8] sm:$0xff] %vm84, %v245
    // Predicated region
    $region22: #{tpu_custom_call.1} parent=1 // pred_check
      _
    $region23: #{tpu_custom_call.1} parent=1 // pred_check_branch
      %251 = sbr.rel (0) target = $region25
    $region24: #{tpu_custom_call.1} parent=1 // pred_region
      %s253 = ssub.s32 256, 256
      %254 = vsyncadd [#allocation3], %s253
      %s255 = sshll.u32 [#allocation2], 4
      %s256 = int_to_ptr.vmem [resolvable:$true] %s255
      %261 = dma.vmem_to_hbm [thread:$0]  %s256, 256, %s5, [#allocation3], 128, 128, 8
    $region25: #{tpu_custom_call.1} parent=1 // pred_fallthru
      _
    // Predicated region
    $region26: #{tpu_custom_call.1} parent=1 // pred_check
      _
    $region27: #{tpu_custom_call.1} parent=1 // pred_check_branch
      %263 = sbr.rel (0) target = $region29
    $region28: #{tpu_custom_call.1} parent=1 // pred_region
      %264 = dma.done [#allocation3], 256
    $region29: #{tpu_custom_call.1} parent=1 // pred_fallthru
      _
    %265 = vsyncpa [#allocation3], 1

</llo_original>
